<compile_context>
chip_gen: v6e
topology: v6e:2x2x1
jax: 0.10.0
libtpu: 0.0.40
codegen_flags: <defaults>
</compile_context>

<pallas_src>
import jax
import jax.numpy as jnp
from jax import lax
from jax.experimental import pallas as pl
from jax.experimental.pallas import tpu as pltpu

_MB = 1024 * 1024


# ---------------------------------------------------------------------------
# Fused path: whole (Bt, C, N) slab per grid step.
# ---------------------------------------------------------------------------
def _cam_fused_kernel(gamma_ref, x_ref, out_ref, attn_ref):
    # gamma_ref: SMEM (1,)   x_ref/out_ref: (Bt, C, N)   attn_ref: (Bt, C, C)
    x = x_ref[...]                                   # f32
    xb = x.astype(jnp.bfloat16)                      # bf16 MXU operands

    # energy[b,i,j] = sum_n x[b,i,n] * x[b,j,n]  (x @ x^T, no transpose DMA)
    energy = jnp.einsum("bin,bjn->bij", xb, xb,
                        preferred_element_type=jnp.float32)      # (Bt, C, C)

    # softmax(rowmax(E) - E) == softmax(-E); stable shift of -E is -rowmin(E):
    # a single row reduction and a single exp pass.
    row_min = jnp.min(energy, axis=-1, keepdims=True)
    p = jnp.exp(row_min - energy)
    inv_den = pl.reciprocal(jnp.sum(p, axis=-1, keepdims=True), approx=False)
    attn = p * inv_den                                            # (Bt, C, C)

    out = jnp.einsum("bij,bjn->bin", attn.astype(jnp.bfloat16), xb,
                     preferred_element_type=jnp.float32)          # (Bt, C, N)

    gamma = gamma_ref[0]
    out_ref[...] = (gamma * out + x).astype(out_ref.dtype)
    attn_ref[...] = attn.astype(attn_ref.dtype)


def _cam_fused(x, gamma1d, block_b, vmem_limit_bytes):
    B, C, N = x.shape
    cp_kwargs = {}
    if vmem_limit_bytes is not None:
        cp_kwargs["vmem_limit_bytes"] = int(vmem_limit_bytes)

    return pl.pallas_call(
        _cam_fused_kernel,
        grid=(B // block_b,),
        out_shape=(
            jax.ShapeDtypeStruct((B, C, N), x.dtype),
            jax.ShapeDtypeStruct((B, C, C), jnp.float32),
        ),
        in_specs=[
            pl.BlockSpec(memory_space=pltpu.MemorySpace.SMEM),      # gamma
            pl.BlockSpec((block_b, C, N), lambda b: (b, 0, 0)),     # x
        ],
        out_specs=(
            pl.BlockSpec((block_b, C, N), lambda b: (b, 0, 0)),     # out
            pl.BlockSpec((block_b, C, C), lambda b: (b, 0, 0)),     # attention
        ),
        input_output_aliases={1: 0},                                 # x -> out
        compiler_params=pltpu.CompilerParams(
            dimension_semantics=("parallel",), **cp_kwargs),
    )(gamma1d, x)


# ---------------------------------------------------------------------------
# N-tiled path: bounds VMEM to (C, tile_n) slabs + one (C, C) scratch.
# ---------------------------------------------------------------------------
def _cam_attn_kernel(x_ref, attn_ref, acc_ref):
    # x_ref: (1, C, tn)   attn_ref: (1, C, C)   acc_ref: VMEM (C, C) f32
    k = pl.program_id(1)

    @pl.when(k == 0)
    def _():
        acc_ref[...] = jnp.zeros_like(acc_ref)

    xb = x_ref[0].astype(jnp.bfloat16)                              # (C, tn)
    acc_ref[...] += lax.dot_general(
        xb, xb,
        dimension_numbers=(((1,), (1,)), ((), ())),                 # x @ x^T
        preferred_element_type=jnp.float32)

    @pl.when(k == pl.num_programs(1) - 1)
    def _():
        energy = acc_ref[...]
        row_min = jnp.min(energy, axis=-1, keepdims=True)
        p = jnp.exp(row_min - energy)
        inv_den = pl.reciprocal(jnp.sum(p, axis=-1, keepdims=True), approx=False)
        attn_ref[0] = (p * inv_den).astype(attn_ref.dtype)


def _cam_out_kernel(gamma_ref, attn_ref, x_ref, out_ref):
    # gamma_ref: SMEM (1,)   attn_ref: (1, C, C)   x_ref/out_ref: (1, C, tn)
    x = x_ref[0]
    out = jnp.dot(attn_ref[0].astype(jnp.bfloat16), x.astype(jnp.bfloat16),
                  preferred_element_type=jnp.float32)
    out_ref[0] = (gamma_ref[0] * out + x).astype(out_ref.dtype)


def _cam_tiled(x, gamma1d, tile_n, vmem_limit_bytes):
    B, C, N = x.shape
    assert N % tile_n == 0, "tile_n must divide N"
    nt = N // tile_n
    cp_kwargs = {}
    if vmem_limit_bytes is not None:
        cp_kwargs["vmem_limit_bytes"] = int(vmem_limit_bytes)

    # Pass 1: accumulate energy over N tiles (softmax is over C, so it can only
    # be applied after ALL N tiles have been accumulated).
    attn = pl.pallas_call(
        _cam_attn_kernel,
        grid=(B, nt),
        out_shape=jax.ShapeDtypeStruct((B, C, C), jnp.float32),
        in_specs=[pl.BlockSpec((1, C, tile_n), lambda b, k: (b, 0, k))],
        out_specs=pl.BlockSpec((1, C, C), lambda b, k: (b, 0, 0)),
        scratch_shapes=[pltpu.VMEM((C, C), jnp.float32)],
        compiler_params=pltpu.CompilerParams(
            dimension_semantics=("parallel", "arbitrary"), **cp_kwargs),
    )(x)

    # Pass 2: out[:, :, tile] = gamma * attn @ x_tile + x_tile (lane-dense).
    out = pl.pallas_call(
        _cam_out_kernel,
        grid=(B, nt),
        out_shape=jax.ShapeDtypeStruct((B, C, N), x.dtype),
        in_specs=[
            pl.BlockSpec(memory_space=pltpu.MemorySpace.SMEM),       # gamma
            pl.BlockSpec((1, C, C), lambda b, k: (b, 0, 0)),         # attention
            pl.BlockSpec((1, C, tile_n), lambda b, k: (b, 0, k)),    # x
        ],
        out_specs=pl.BlockSpec((1, C, tile_n), lambda b, k: (b, 0, k)),
        input_output_aliases={2: 0},                                  # x -> out
        compiler_params=pltpu.CompilerParams(
            dimension_semantics=("parallel", "parallel"), **cp_kwargs),
    )(gamma1d, attn, x)
    return out, attn


# ---------------------------------------------------------------------------
# Wrapper: path selection + tiling/VMEM budgeting.
# ---------------------------------------------------------------------------
def _pick_block_b(B, per_batch_bytes, budget_bytes):
    # Amortize the ~0.35 us/step grid overhead when per-step work is tiny,
    # but keep >= 2 grid steps (when B >= 2) so v7x megacore has work.
    block_b = 1
    for cand in range(2, B + 1):
        if B % cand:
            continue
        if cand * per_batch_bytes > budget_bytes:
            break
        if B >= 2 and B // cand < 2:
            continue
        block_b = cand
    return block_b


def _pick_tile_n(C, N):
    # Largest multiple-of-128 divisor of N whose x/out tile stays modest.
    target_bytes = 8 * _MB
    best = None
    for tn in range(128, N + 1, 128):
        if N % tn:
            continue
        if best is None or 4 * C * tn <= target_bytes:
            best = tn
    return best if best is not None else N  # no 128-divisor: fall back to full N


def cam_forward(x, gamma, *, force_tiled=False, tile_n=None):
    """CAM_Module forward.  x: (B, C, N) float32, gamma: scalar parameter.
    Returns (out, attention) with shapes (B, C, N) and (B, C, C)."""
    B, C, N = x.shape
    gamma1d = jnp.asarray(gamma, dtype=jnp.float32).reshape(1)

    # Rough per-batch-element VMEM working set of the fused path (bytes):
    # double-buffered x/out/attn blocks + bf16 copy + f32 temporaries.
    per_batch_bytes = 4 * (14 * C * N + 20 * C * C)
    fused_budget = 40 * _MB  # conservative vs v7x's 64 MiB physical VMEM

    if force_tiled or per_batch_bytes > fused_budget:
        if tile_n is None:
            tile_n = _pick_tile_n(C, N)
        est = 4 * (6 * C * tile_n + 8 * C * C)
        vmem_limit = min(max(2 * est, 32 * _MB), 60 * _MB) if est > 24 * _MB else None
        return _cam_tiled(x, gamma1d, tile_n, vmem_limit)

    block_b = _pick_block_b(B, per_batch_bytes, fused_budget)
    est = block_b * per_batch_bytes
    vmem_limit = min(max(2 * est, 32 * _MB), 60 * _MB) if est > 24 * _MB else None
    return _cam_fused(x, gamma1d, block_b, vmem_limit)


if __name__ == "__main__":
    # Small shapes consistent with the module: B batches, C channels, N points.
    B, C, N = 2, 32, 256

    key = jax.random.PRNGKey(0)
    x = 0.1 * jax.random.normal(key, (B, C, N), dtype=jnp.float32)
    # The module initializes gamma to 0 (out == x); use a nonzero value so the
    # full attention path is exercised by the check.
    gamma = jnp.float32(0.5)

    # Plain-JAX reference of the module's math.
    energy_ref = jnp.einsum("bcn,bdn->bcd", x, x, precision=lax.Precision.HIGHEST)
    e_max = jnp.max(energy_ref, axis=-1, keepdims=True)
    attn_ref = jax.nn.softmax(e_max - energy_ref, axis=-1)
    out_ref = gamma * jnp.einsum("bcd,bdn->bcn", attn_ref, x,
                                 precision=lax.Precision.HIGHEST) + x

    def check(out, attn):
        assert out.shape == (B, C, N)
        assert attn.shape == (B, C, C)
        assert jnp.allclose(jnp.sum(attn, axis=-1), 1.0, atol=1e-4)
        assert jnp.allclose(attn, attn_ref, atol=2e-3, rtol=2e-3)
        assert jnp.allclose(out, out_ref, atol=2e-3, rtol=2e-3)

    # Fused path (whole (C, N) slab per batch element per grid step).
    out_f, attn_f = cam_forward(x, gamma)
    jax.block_until_ready((out_f, attn_f))
    check(out_f, attn_f)

    # N-tiled path — the structure used when C*N is too large for VMEM —
    # exercised here at small scale with tile_n=128.
    out_t, attn_t = cam_forward(x, gamma, force_tiled=True, tile_n=128)
    jax.block_until_ready((out_t, attn_t))
    check(out_t, attn_t)

    print("KERNEL_OK")
</pallas_src>

<mosaic_0001>
module attributes {stable_mosaic.version = 11 : i64} {
  func.func @_cam_fused_kernel(%arg0: i32, %arg1: memref<1xf32, #tpu.memory_space<smem>>, %arg2: memref<1x32x256xf32, #tpu.memory_space<vmem>>, %arg3: memref<1x32x256xf32, #tpu.memory_space<vmem>>, %arg4: memref<1x32x32xf32, #tpu.memory_space<vmem>>) attributes {dimension_semantics = [#tpu.dimension_semantics<parallel>], iteration_bounds = array<i64: 2>, scalar_prefetch = 0 : i64, scratch_operands = 0 : i64, tpu.core_type = #tpu.core_type<tc>, window_params = [{transform_indices = @transform_0, window_bounds = array<i64: 1>}, {transform_indices = @transform_1, window_bounds = array<i64: 1, 32, 256>}, {transform_indices = @transform_2, window_bounds = array<i64: 1, 32, 256>}, {transform_indices = @transform_3, window_bounds = array<i64: 1, 32, 32>}]} {
    %c0 = arith.constant 0 : index
    %c0_0 = arith.constant 0 : index
    %c0_1 = arith.constant 0 : index
    %0 = vector.load %arg2[%c0, %c0_0, %c0_1] : memref<1x32x256xf32, #tpu.memory_space<vmem>>, vector<1x32x256xf32>
    %1 = arith.truncf %0 : vector<1x32x256xf32> to vector<1x32x256xbf16>
    "tpu.trace_start"() <{level = 10 : i32, message = "bin,bjn->bij"}> : () -> ()
    %cst = arith.constant dense<0.000000e+00> : vector<1x32x32xf32>
    %2 = tpu.matmul %1, %1, %cst {dimension_numbers = #tpu.dot_dimension_numbers<[2], [2], [1], [1], [0, 0, 0, 1, 1, 1], [0], [0]>} : vector<1x32x256xbf16>, vector<1x32x256xbf16>, vector<1x32x32xf32> -> vector<1x32x32xf32>
    "tpu.trace_stop"() : () -> ()
    %cst_2 = arith.constant dense<0x7F800000> : vector<1x32xf32>
    %3 = vector.multi_reduction <minimumf>, %2, %cst_2 [2] : vector<1x32x32xf32> to vector<1x32xf32>
    %4 = vector.shape_cast %3 : vector<1x32xf32> to vector<1x32x1xf32>
    %5 = vector.broadcast %4 : vector<1x32x1xf32> to vector<1x32x32xf32>
    %6 = arith.subf %5, %2 : vector<1x32x32xf32>
    %7 = math.exp %6 : vector<1x32x32xf32>
    %cst_3 = arith.constant dense<0.000000e+00> : vector<1x32xf32>
    %8 = vector.multi_reduction <add>, %7, %cst_3 [2] : vector<1x32x32xf32> to vector<1x32xf32>
    %9 = vector.shape_cast %8 : vector<1x32xf32> to vector<1x32x1xf32>
    %10 = tpu.reciprocal %9 : vector<1x32x1xf32> -> vector<1x32x1xf32>
    %11 = vector.broadcast %10 : vector<1x32x1xf32> to vector<1x32x32xf32>
    %12 = arith.mulf %7, %11 : vector<1x32x32xf32>
    %13 = arith.truncf %12 : vector<1x32x32xf32> to vector<1x32x32xbf16>
    "tpu.trace_start"() <{level = 10 : i32, message = "bij,bjn->bin"}> : () -> ()
    %cst_4 = arith.constant dense<0.000000e+00> : vector<1x32x256xf32>
    %14 = tpu.matmul %13, %1, %cst_4 {dimension_numbers = #tpu.dot_dimension_numbers<[2], [1], [1], [2], [0, 0, 0, 1, 1, 2], [0], [0]>} : vector<1x32x32xbf16>, vector<1x32x256xbf16>, vector<1x32x256xf32> -> vector<1x32x256xf32>
    "tpu.trace_stop"() : () -> ()
    %c0_5 = arith.constant 0 : index
    %15 = memref.load %arg1[%c0_5] : memref<1xf32, #tpu.memory_space<smem>>
    %16 = vector.broadcast %15 : f32 to vector<1x32x256xf32>
    %17 = arith.mulf %16, %14 : vector<1x32x256xf32>
    %18 = arith.addf %17, %0 : vector<1x32x256xf32>
    %c0_6 = arith.constant 0 : index
    %c0_7 = arith.constant 0 : index
    %c0_8 = arith.constant 0 : index
    %19 = vector.load %arg3[%c0_6, %c0_7, %c0_8] : memref<1x32x256xf32, #tpu.memory_space<vmem>>, vector<1x32x256xf32>
    tpu.vector_store %arg3[%c0_6, %c0_7, %c0_8], %18 {strides = array<i32>} : memref<1x32x256xf32, #tpu.memory_space<vmem>>, vector<1x32x256xf32>,
    %c0_9 = arith.constant 0 : index
    %c0_10 = arith.constant 0 : index
    %c0_11 = arith.constant 0 : index
    %20 = vector.load %arg4[%c0_9, %c0_10, %c0_11] : memref<1x32x32xf32, #tpu.memory_space<vmem>>, vector<1x32x32xf32>
    tpu.vector_store %arg4[%c0_9, %c0_10, %c0_11], %12 {strides = array<i32>} : memref<1x32x32xf32, #tpu.memory_space<vmem>>, vector<1x32x32xf32>,
    return
  }
  func.func @transform_0(%arg0: i32) -> i32 {
    %c0_i32 = arith.constant 0 : i32
    %c0_i32_0 = arith.constant 0 : i32
    return %c0_i32 : i32
  }
  func.func @transform_1(%arg0: i32) -> (i32, i32, i32) {
    %c0_i32 = arith.constant 0 : i32
    %c0_i32_0 = arith.constant 0 : i32
    %c0_i32_1 = arith.constant 0 : i32
    return %arg0, %c0_i32, %c0_i32_0 : i32, i32, i32
  }
  func.func @transform_2(%arg0: i32) -> (i32, i32, i32) {
    %c0_i32 = arith.constant 0 : i32
    %c0_i32_0 = arith.constant 0 : i32
    %c0_i32_1 = arith.constant 0 : i32
    return %arg0, %c0_i32, %c0_i32_0 : i32, i32, i32
  }
  func.func @transform_3(%arg0: i32) -> (i32, i32, i32) {
    %c0_i32 = arith.constant 0 : i32
    %c0_i32_0 = arith.constant 0 : i32
    %c0_i32_1 = arith.constant 0 : i32
    return %arg0, %c0_i32, %c0_i32_0 : i32, i32, i32
  }
}

</mosaic_0001>

<llo_original>
// kernel: tpu_custom_call.1
$region0: #{tpu_custom_call.1}
  #allocation0 [shape = 'u32[]', space=smem, size = 0x4, offset = 0x4, fixed_abs, tag = 'smem constant byte address 0x4 - core index']
  #allocation1 [shape = 'u32[144,128]{1,0:T(1,128)}', space=vmem, size = 0x12000, scoped, tag = 'internal scratch']
  #allocation2 [shape = 'f32[1]{0:T(128)S(6)}', space=smem, size = 0x200, scoped, tag = 'scoped memory for tpu_custom_call.1']
  %s0 = inlined_call_operand.<no memory space> [shape: f32[1], index: 0, kind: input, shape index: {}]
  %s1 = inlined_call_operand.hbm [shape: f32[2,32,256], index: 1, kind: input, shape index: {}, may-alias: {1,2}]
  %s2 = inlined_call_operand.hbm [shape: f32[2,32,256], index: 2, kind: output, shape index: {0}, may-alias: {1,2}]
  %s3 = inlined_call_operand.hbm [shape: f32[2,32,32], index: 3, kind: output, shape index: {1}]
  %4 = xla_tuple %s2, %s3
  %s5 = sld [smem:[#allocation0]]
  $region53: #{tpu_custom_call.1} parent=0
    _
  %s7 = ssub.s32 1, %s5
  %s8 = scalar_select 0, %s7, %s5
  %9 = sst [smem:[#allocation2]] %s0
  $region1: #{tpu_custom_call.1} parent=0
    #allocation3 [shape = 'u8[65536]{0}', space=vmem, size = 0x10000, scoped, tag = 'input window, operand 1']
    #allocation4 [shape = 's32[2]{0}', space=sflag, size = 0x8, scoped, tag = 'scoped memory for tpu_custom_call.1']
    #allocation5 [shape = 's32[2]{0}', space=sflag, size = 0x8, scoped, tag = 'scoped memory for tpu_custom_call.1']
    #allocation6 [shape = 'u8[65536]{0}', space=vmem, size = 0x10000, scoped, tag = 'output window, operand 0']
    #allocation7 [shape = 'u8[32768]{0}', space=vmem, size = 0x8000, scoped, tag = 'output window, operand 1']
    #allocation8 [shape = 's32[2]{0}', space=sflag, size = 0x8, scoped, tag = 'scoped memory for tpu_custom_call.1']
    %10 = vsyncpa [#allocation4], 0
    %s11 = scalar_lea.sflag [#allocation4], 1
    %12 = vsyncpa %s11, 0
    %13 = vsyncpa [#allocation5], 0
    %s14 = scalar_lea.sflag [#allocation5], 1
    %15 = vsyncpa %s14, 0
    %16 = vsyncpa [#allocation8], 0
    %s17 = scalar_lea.sflag [#allocation8], 1
    %18 = vsyncpa %s17, 0
    loop: start=0, step=1, limit=4
    $region2: #{tpu_custom_call.1} parent=1 // loop_pre_header
      _
    $region3: #{tpu_custom_call.1} parent=1 // loop_header
      %s20 = sphi 0, %s24
      %p21 = scmp.ge.s32.totalorder %s20, 4
      %s28 = sphi 0, %s28
      %s30 = sphi 0, %s28
      %s31 = sphi 0, %s30
      %s45 = sphi 0, %s31
      %s51 = sphi 0, %s53
      %s54 = sphi 0, %s51
      %s55 = sphi 0, %s54
      %s71 = sphi 0, %s55
      %s77 = sphi 0, %s79
      %s80 = sphi 0, %s77
      %s81 = sphi 0, %s80
      %s97 = sphi 0, %s81
      %s103 = sphi 0, %s105
      %s106 = sphi 0, %s103
      %s107 = sphi 0, %s106
      %s123 = sphi 0, %s107
    $region4: #{tpu_custom_call.1} parent=1 // loop_header_branch
      %23 = sbr.rel (%p21) target = $region8
    $region5: #{tpu_custom_call.1} parent=1 // loop_body
      %s25 = ssub.s32 %s20, 1
      %s26 = ssub.s32 %s20, 2
      %s27 = sadd.s32 %s20, 1
      %s29 = sadd.s32 %s28, 1
      %p32 = scmp.eq.s32.totalorder %s20, 1
      %p33 = scmp.ne.s32.totalorder %s28, %s30
      %p34 = scmp.eq.s32.totalorder %s20, 0
      %p35 = por %p33, %p34
      %p36 = scmp.ne.s32.totalorder %s28, %s30
      %p37 = scmp.eq.s32.totalorder %s25, 1
      %p38 = por %p36, %p37
      %p39 = scmp.ne.s32.totalorder %s30, %s31
      %p40 = scmp.eq.s32.totalorder %s25, 0
      %p41 = por %p39, %p40
      %p42 = scmp.ne.s32.totalorder %s30, %s31
      %p43 = scmp.eq.s32.totalorder %s26, 1
      %p44 = por %p42, %p43
      %p46 = scmp.ne.s32.totalorder %s31, %s45
      %p47 = scmp.eq.s32.totalorder %s26, 0
      %p48 = por %p46, %p47
      %s49 = ssub.s32 %s20, %s27
      %p50 = scmp.eq.s32.totalorder %s49, 0
      %s52 = sadd.s32 %s51, 1
      %s53 = scalar_select %p50, %s51, %s52
      %p56 = pneg %p50
      %p57 = scmp.eq.s32.totalorder %s20, 1
      %p58 = por %p56, %p57
      %p59 = scmp.ne.s32.totalorder %s51, %s54
      %p60 = scmp.eq.s32.totalorder %s20, 0
      %p61 = por %p59, %p60
      %p62 = scmp.ne.s32.totalorder %s51, %s54
      %p63 = scmp.eq.s32.totalorder %s25, 1
      %p64 = por %p62, %p63
      %p65 = scmp.ne.s32.totalorder %s54, %s55
      %p66 = scmp.eq.s32.totalorder %s25, 0
      %p67 = por %p65, %p66
      %p68 = scmp.ne.s32.totalorder %s54, %s55
      %p69 = scmp.eq.s32.totalorder %s26, 1
      %p70 = por %p68, %p69
      %p72 = scmp.ne.s32.totalorder %s55, %s71
      %p73 = scmp.eq.s32.totalorder %s26, 0
      %p74 = por %p72, %p73
      %s75 = ssub.s32 %s20, %s27
      %p76 = scmp.eq.s32.totalorder %s75, 0
      %s78 = sadd.s32 %s77, 1
      %s79 = scalar_select %p76, %s77, %s78
      %p82 = pneg %p76
      %p83 = scmp.eq.s32.totalorder %s20, 1
      %p84 = por %p82, %p83
      %p85 = scmp.ne.s32.totalorder %s77, %s80
      %p86 = scmp.eq.s32.totalorder %s20, 0
      %p87 = por %p85, %p86
      %p88 = scmp.ne.s32.totalorder %s77, %s80
      %p89 = scmp.eq.s32.totalorder %s25, 1
      %p90 = por %p88, %p89
      %p91 = scmp.ne.s32.totalorder %s80, %s81
      %p92 = scmp.eq.s32.totalorder %s25, 0
      %p93 = por %p91, %p92
      %p94 = scmp.ne.s32.totalorder %s80, %s81
      %p95 = scmp.eq.s32.totalorder %s26, 1
      %p96 = por %p94, %p95
      %p98 = scmp.ne.s32.totalorder %s81, %s97
      %p99 = scmp.eq.s32.totalorder %s26, 0
      %p100 = por %p98, %p99
      %s101 = ssub.s32 %s20, %s27
      %p102 = scmp.eq.s32.totalorder %s101, 0
      %s104 = sadd.s32 %s103, 1
      %s105 = scalar_select %p102, %s103, %s104
      %p108 = pneg %p102
      %p109 = scmp.eq.s32.totalorder %s20, 1
      %p110 = por %p108, %p109
      %p111 = scmp.ne.s32.totalorder %s103, %s106
      %p112 = scmp.eq.s32.totalorder %s20, 0
      %p113 = por %p111, %p112
      %p114 = scmp.ne.s32.totalorder %s103, %s106
      %p115 = scmp.eq.s32.totalorder %s25, 1
      %p116 = por %p114, %p115
      %p117 = scmp.ne.s32.totalorder %s106, %s107
      %p118 = scmp.eq.s32.totalorder %s25, 0
      %p119 = por %p117, %p118
      %p120 = scmp.ne.s32.totalorder %s106, %s107
      %p121 = scmp.eq.s32.totalorder %s26, 1
      %p122 = por %p120, %p121
      %p124 = scmp.ne.s32.totalorder %s107, %s123
      %p125 = scmp.eq.s32.totalorder %s26, 0
      %p126 = por %p124, %p125
      %p127 = scmp.le.s32.totalorder 1, %s20
      %p128 = scmp.lt.s32.totalorder %s20, 3
      %p129 = pnand %p127, %p128
      %p130 = pneg %p129
      // Predicated region
      $region9: #{tpu_custom_call.1} parent=5 // pred_check
        _
      $region10: #{tpu_custom_call.1} parent=5 // pred_check_branch
        %132 = sbr.rel (%p129) target = $region12
      $region11: #{tpu_custom_call.1} parent=5 // pred_region
        %s133 = ssub.s32 %s20, 1
        // Predicated region
        $region13: #{tpu_custom_call.1} parent=11 // pred_check
          %p134 = pneg %p41
        $region14: #{tpu_custom_call.1} parent=11 // pred_check_branch
          %136 = sbr.rel (%p134) target = $region16
        $region15: #{tpu_custom_call.1} parent=11 // pred_region
          _
        $region16: #{tpu_custom_call.1} parent=11 // pred_fallthru
          _
      $region12: #{tpu_custom_call.1} parent=5 // pred_fallthru
        _
      %p137 = scmp.lt.s32.totalorder %s20, 2
      // Predicated region
      $region17: #{tpu_custom_call.1} parent=5 // pred_check
        %p138 = pneg %p137
      $region18: #{tpu_custom_call.1} parent=5 // pred_check_branch
        %140 = sbr.rel (%p138) target = $region20
      $region19: #{tpu_custom_call.1} parent=5 // pred_region
        // Predicated region
        $region21: #{tpu_custom_call.1} parent=19 // pred_check
          %p141 = pneg %p61
        $region22: #{tpu_custom_call.1} parent=19 // pred_check_branch
          %143 = sbr.rel (%p141) target = $region24
        $region23: #{tpu_custom_call.1} parent=19 // pred_region
          %s144 = sand.u32 %s51, 1
          %s145 = scalar_lea.sflag [#allocation4], %s144
          %s146 = sand.u32 %s51, 1
          %s147 = smul.addr %s146, 64
          %s148 = scalar_lea.vmem [#allocation3], %s147
          %s150 = ssub.s32 1024, 1024
          %151 = vsyncadd %s145, %s150
          %s152 = smul.addr %s20, 8
          %s153 = smul.addr %s152, 128
          %s154 = scalar_lea.hbm %s1, %s153
          %s155 = sshll.u32 %s148, 4
          %s156 = int_to_ptr.vmem [resolvable:$true] %s155
          %161 = dma.hbm_to_vmem [thread:$0]  %s154, 1024, %s156, %s145, 256, 256, 16
        $region24: #{tpu_custom_call.1} parent=19 // pred_fallthru
          _
      $region20: #{tpu_custom_call.1} parent=5 // pred_fallthru
        _
      %p162 = scmp.le.s32.totalorder 1, %s20
      %p163 = scmp.lt.s32.totalorder %s20, 3
      %p164 = pnand %p162, %p163
      %p165 = pneg %p164
      // Predicated region
      $region25: #{tpu_custom_call.1} parent=5 // pred_check
        _
      $region26: #{tpu_custom_call.1} parent=5 // pred_check_branch
        %167 = sbr.rel (%p164) target = $region28
      $region27: #{tpu_custom_call.1} parent=5 // pred_region
        %s168 = ssub.s32 %s20, 1
        %s169 = sand.u32 %s54, 1
        %s170 = scalar_lea.sflag [#allocation4], %s169
        %s171 = sand.u32 %s54, 1
        %s172 = smul.addr %s171, 64
        %s173 = scalar_lea.vmem [#allocation3], %s172
        // Predicated region
        $region29: #{tpu_custom_call.1} parent=27 // pred_check
          %p174 = pneg %p67
        $region30: #{tpu_custom_call.1} parent=27 // pred_check_branch
          %176 = sbr.rel (%p174) target = $region32
        $region31: #{tpu_custom_call.1} parent=27 // pred_region
          %177 = dma.done %s170, 1024
        $region32: #{tpu_custom_call.1} parent=27 // pred_fallthru
          _
        %p178 = pneg %p41
        %p179 = pneg %p38
        %s180 = sand.u32 %s54, 1
        %s181 = scalar_lea.sflag [#allocation4], %s180
        %s182 = sand.u32 %s54, 1
        %s183 = smul.addr %s182, 64
        %s184 = scalar_lea.vmem [#allocation3], %s183
        %p185 = pneg %p67
        %p186 = pneg %p64
        %p187 = pneg %p93
        %p188 = pneg %p90
        %s189 = sand.u32 %s80, 1
        %s190 = scalar_lea.sflag [#allocation5], %s189
        %s191 = sand.u32 %s80, 1
        %s192 = smul.addr %s191, 64
        %s193 = scalar_lea.vmem [#allocation6], %s192
        %p194 = pneg %p119
        %p195 = pneg %p116
        %s196 = sand.u32 %s106, 1
        %s197 = scalar_lea.sflag [#allocation8], %s196
        %s198 = sand.u32 %s106, 1
        %s199 = smul.addr %s198, 32
        %s200 = scalar_lea.vmem [#allocation7], %s199
        %v202 = vld [vmem:[%s173] sm:$0xff]
        %v203 = vld [vmem:[%s173 + $0x8] sm:$0xff]
        %v204 = vld [vmem:[%s173 + $0x10] sm:$0xff]
        %v205 = vld [vmem:[%s173 + $0x18] sm:$0xff]
        %v206 = vld [vmem:[%s173 + $0x20] sm:$0xff]
        %v207 = vld [vmem:[%s173 + $0x28] sm:$0xff]
        %v208 = vld [vmem:[%s173 + $0x30] sm:$0xff]
        %v209 = vld [vmem:[%s173 + $0x38] sm:$0xff]
        %v210 = vpack.c.bf16 %v204, %v202
        %v211 = vpack.c.bf16 %v205, %v203
        %v212 = vpack.c.bf16 %v208, %v206
        %v213 = vpack.c.bf16 %v209, %v207
        %214 = vmatprep.subr.bf16.mxu0 0
        %215 = vmatpush1.bf16.xpose.msra.mxu0 0
        %216 = vmatprep.subr.bf16.mxu0 0
        %217 = vmatpush1.bf16.xpose.msra.mxu0 0
        %218 = vmatprep.subr.bf16.mxu0 0
        %219 = vmatpush1.bf16.xpose.msra.mxu0 0
        %220 = vmatprep.subr.bf16.mxu0 0
        %221 = vmatpush1.bf16.xpose.msra.mxu0 0
        %222 = vmatprep.subr.bf16.mxu0 0
        %223 = vmatpush1.bf16.xpose.msra.mxu0 0
        %224 = vmatprep.subr.bf16.mxu0 0
        %225 = vmatpush1.bf16.xpose.msra.mxu0 0
        %226 = vmatprep.subr.bf16.mxu0 %v213
        %227 = vmatpush1.bf16.xpose.msra.mxu0 %v212
        %228 = vmatprep.subr.bf16.mxu0 %v211
        %229 = vmatpush1.bf16.xpose.msra.mxu0 %v210
        %230 = vmatprep.subr.bf16.mxu0 0
        %231 = vmatpush2.bf16.xpose.msra.mxu0 0
        %232 = vmatprep.subr.bf16.mxu0 0
        %233 = vmatpush2.bf16.xpose.msra.mxu0 0
        %234 = vmatprep.subr.bf16.mxu0 0
        %235 = vmatpush2.bf16.xpose.msra.mxu0 0
        %236 = vmatprep.subr.bf16.mxu0 0
        %237 = vmatpush2.bf16.xpose.msra.mxu0 0
        %238 = vmatprep.subr.bf16.mxu0 0
        %239 = vmatpush2.bf16.xpose.msra.mxu0 0
        %240 = vmatprep.subr.bf16.mxu0 0
        %241 = vmatpush2.bf16.xpose.msra.mxu0 0
        %242 = vmatprep.subr.bf16.mxu0 0
        %243 = vmatpush2.bf16.xpose.msra.mxu0 0
        %244 = vmatprep.subr.bf16.mxu0 0
        %245 = vmatpush2.bf16.xpose.msra.mxu0 0
        %246 = vmatprep.mubr.bf16.mxu0 %v211
        %247 = vmatmul.mubr.bf16.gmra.mxu0 %v210
        %v248 = vpop.f32.mrf.mxu0
        %v249 = vadd.f32 0.0, %v248
        %v250 = vpop.f32.mrf.mxu0
        %v251 = vpop.f32.mrf.mxu0
        %v252 = vadd.f32 0.0, %v251
        %v253 = vpop.f32.mrf.mxu0
        %254 = vmatprep.mubr.bf16.mxu0 %v213
        %255 = vmatmul.mubr.bf16.gmra.mxu0 %v212
        %v256 = vpop.f32.mrf.mxu0
        %v257 = vadd.f32 0.0, %v256
        %v258 = vpop.f32.mrf.mxu0
        %v259 = vpop.f32.mrf.mxu0
        %v260 = vadd.f32 0.0, %v259
        %v261 = vpop.f32.mrf.mxu0
        %262 = vdwg.mxu0
        %vm263 = vcmask 261120
        %v264 = vsel %vm263, %v249, inf
        %265 = vmin.xlane.f32.xlu0 %v264
        %v266 = vpop.xlane.xlu0 %265
        %v267 = vsel %vm263, %v252, inf
        %268 = vmin.xlane.f32.xlu0 %v267
        %v269 = vpop.xlane.xlu0 %268
        %v270 = vsel %vm263, %v257, inf
        %271 = vmin.xlane.f32.xlu0 %v270
        %v272 = vpop.xlane.xlu0 %271
        %v273 = vsel %vm263, %v260, inf
        %274 = vmin.xlane.f32.xlu0 %v273
        %v275 = vpop.xlane.xlu0 %274
        %v276 = vsub.f32 %v266, %v249
        %v277 = vsub.f32 %v269, %v252
        %v278 = vsub.f32 %v272, %v257
        %v279 = vsub.f32 %v275, %v260
        %v280 = vmul.f32 %v276, 1.442695
        %v281 = vpow.pop %v280
        %v282 = vmul.f32 %v277, 1.442695
        %v283 = vpow.pop %v282
        %v284 = vmul.f32 %v278, 1.442695
        %v285 = vpow.pop %v284
        %v286 = vmul.f32 %v279, 1.442695
        %v287 = vpow.pop %v286
        %v288 = vsel %vm263, %v281, 0.0
        %289 = vadd.xlane.f32.xlu0 %v288
        %v290 = vpop.xlane.xlu0 %289
        %v291 = vsel %vm263, %v283, 0.0
        %292 = vadd.xlane.f32.xlu0 %v291
        %v293 = vpop.xlane.xlu0 %292
        %v294 = vsel %vm263, %v285, 0.0
        %295 = vadd.xlane.f32.xlu0 %v294
        %v296 = vpop.xlane.xlu0 %295
        %v297 = vsel %vm263, %v287, 0.0
        %298 = vadd.xlane.f32.xlu0 %v297
        %v299 = vpop.xlane.xlu0 %298
        %v300 = vrcp.pop %v290
        %v301 = vrcp.pop %v293
        %v302 = vrcp.pop %v296
        %v303 = vrcp.pop %v299
        %v304 = vmul.f32 %v281, %v300
        %v305 = vmul.f32 %v283, %v301
        %v306 = vmul.f32 %v285, %v302
        %v307 = vmul.f32 %v287, %v303
        %v308 = vpack.c.bf16 %v305, %v304
        %v309 = vpack.c.bf16 %v307, %v306
        %v311 = vsel %vm263, %v308, 0
        %v314 = vsel %vm263, %v309, 0
        %316 = vmatprep.subr.bf16.mxu0 0
        %317 = vmatpush1.bf16.msra.mxu0 0
        %318 = vmatprep.subr.bf16.mxu0 0
        %319 = vmatpush1.bf16.msra.mxu0 0
        %320 = vmatprep.subr.bf16.mxu0 0
        %321 = vmatpush1.bf16.msra.mxu0 0
        %322 = vmatprep.subr.bf16.mxu0 0
        %323 = vmatpush1.bf16.msra.mxu0 0
        %324 = vmatprep.subr.bf16.mxu0 0
        %325 = vmatpush1.bf16.msra.mxu0 0
        %326 = vmatprep.subr.bf16.mxu0 0
        %327 = vmatpush1.bf16.msra.mxu0 0
        %328 = vmatprep.subr.bf16.mxu0 %v213
        %329 = vmatpush1.bf16.msra.mxu0 %v212
        %330 = vmatprep.subr.bf16.mxu0 %v211
        %331 = vmatpush1.bf16.msra.mxu0 %v210
        %332 = vmatprep.subr.bf16.mxu0 0
        %333 = vmatpush2.bf16.msra.mxu0 0
        %334 = vmatprep.subr.bf16.mxu0 0
        %335 = vmatpush2.bf16.msra.mxu0 0
        %336 = vmatprep.subr.bf16.mxu0 0
        %337 = vmatpush2.bf16.msra.mxu0 0
        %338 = vmatprep.subr.bf16.mxu0 0
        %339 = vmatpush2.bf16.msra.mxu0 0
        %340 = vmatprep.subr.bf16.mxu0 0
        %341 = vmatpush2.bf16.msra.mxu0 0
        %342 = vmatprep.subr.bf16.mxu0 0
        %343 = vmatpush2.bf16.msra.mxu0 0
        %344 = vmatprep.subr.bf16.mxu0 0
        %345 = vmatpush2.bf16.msra.mxu0 0
        %346 = vmatprep.subr.bf16.mxu0 0
        %347 = vmatpush2.bf16.msra.mxu0 0
        %348 = vmatprep.mubr.bf16.mxu0 0
        %349 = vmatmul.mubr.bf16.gmra.mxu0 %v311
        %v350 = vpop.f32.mrf.mxu0
        %v351 = vadd.f32 0.0, %v350
        %v352 = vpop.f32.mrf.mxu0
        %v353 = vadd.f32 0.0, %v352
        %v354 = vpop.f32.mrf.mxu0
        %v355 = vadd.f32 0.0, %v354
        %v356 = vpop.f32.mrf.mxu0
        %v357 = vadd.f32 0.0, %v356
        %358 = vmatprep.mubr.bf16.mxu0 0
        %359 = vmatmul.mubr.bf16.gmra.mxu0 %v314
        %v360 = vpop.f32.mrf.mxu0
        %v361 = vadd.f32 0.0, %v360
        %v362 = vpop.f32.mrf.mxu0
        %v363 = vadd.f32 0.0, %v362
        %v364 = vpop.f32.mrf.mxu0
        %v365 = vadd.f32 0.0, %v364
        %v366 = vpop.f32.mrf.mxu0
        %v367 = vadd.f32 0.0, %v366
        %368 = vdwg.mxu0
        %s369 = sld [smem:[#allocation2]]
        %v370 = vstv %s369
        %v371 = vmul.f32 %v370, %v351
        %v372 = vmul.f32 %v370, %v353
        %v373 = vmul.f32 %v370, %v355
        %v374 = vmul.f32 %v370, %v357
        %v375 = vmul.f32 %v370, %v361
        %v376 = vmul.f32 %v370, %v363
        %v377 = vmul.f32 %v370, %v365
        %v378 = vmul.f32 %v370, %v367
        %v379 = vadd.f32 %v371, %v202
        %v380 = vadd.f32 %v372, %v203
        %v381 = vadd.f32 %v373, %v204
        %v382 = vadd.f32 %v374, %v205
        %v383 = vadd.f32 %v375, %v206
        %v384 = vadd.f32 %v376, %v207
        %v385 = vadd.f32 %v377, %v208
        %v386 = vadd.f32 %v378, %v209
        %387 = vst [vmem:[%s193] sm:$0xff] %v379
        %388 = vst [vmem:[%s193 + $0x8] sm:$0xff] %v380
        %389 = vst [vmem:[%s193 + $0x10] sm:$0xff] %v381
        %390 = vst [vmem:[%s193 + $0x18] sm:$0xff] %v382
        %391 = vst [vmem:[%s193 + $0x20] sm:$0xff] %v383
        %392 = vst [vmem:[%s193 + $0x28] sm:$0xff] %v384
        %393 = vst [vmem:[%s193 + $0x30] sm:$0xff] %v385
        %394 = vst [vmem:[%s193 + $0x38] sm:$0xff] %v386
        %395 = vst.msk [vmem:[%s200] sm:$0xff] %vm263, %v304
        %396 = vst.msk [vmem:[%s200 + $0x8] sm:$0xff] %vm263, %v305
        %397 = vst.msk [vmem:[%s200 + $0x10] sm:$0xff] %vm263, %v306
        %398 = vst.msk [vmem:[%s200 + $0x18] sm:$0xff] %vm263, %v307
        %s399 = sand.u32 %s80, 1
        %s400 = scalar_lea.sflag [#allocation5], %s399
        %s401 = sand.u32 %s80, 1
        %s402 = smul.addr %s401, 64
        %s403 = scalar_lea.vmem [#allocation6], %s402
        %s404 = sand.u32 %s106, 1
        %s405 = scalar_lea.sflag [#allocation8], %s404
        %s406 = sand.u32 %s106, 1
        %s407 = smul.addr %s406, 32
        %s408 = scalar_lea.vmem [#allocation7], %s407
        // Predicated region
        $region33: #{tpu_custom_call.1} parent=27 // pred_check
          %p409 = pneg %p90
        $region34: #{tpu_custom_call.1} parent=27 // pred_check_branch
          %411 = sbr.rel (%p409) target = $region36
        $region35: #{tpu_custom_call.1} parent=27 // pred_region
          %s413 = ssub.s32 1024, 1024
          %414 = vsyncadd %s400, %s413
          %s415 = smul.addr %s25, 8
          %s416 = smul.addr %s415, 128
          %s417 = scalar_lea.hbm %s2, %s416
          %s418 = sshll.u32 %s403, 4
          %s419 = int_to_ptr.vmem [resolvable:$true] %s418
          %424 = dma.vmem_to_hbm [thread:$0]  %s419, 1024, %s417, %s400, 256, 256, 16
        $region36: #{tpu_custom_call.1} parent=27 // pred_fallthru
          _
        // Predicated region
        $region37: #{tpu_custom_call.1} parent=27 // pred_check
          %p425 = pneg %p116
        $region38: #{tpu_custom_call.1} parent=27 // pred_check_branch
          %427 = sbr.rel (%p425) target = $region40
        $region39: #{tpu_custom_call.1} parent=27 // pred_region
          %s429 = ssub.s32 512, 512
          %430 = vsyncadd %s405, %s429
          %s431 = smul.addr %s25, 4
          %s432 = smul.addr %s431, 128
          %s433 = scalar_lea.hbm %s3, %s432
          %s434 = sshll.u32 %s408, 4
          %s435 = int_to_ptr.vmem [resolvable:$true] %s434
          %440 = dma.vmem_to_hbm [thread:$0]  %s435, 512, %s433, %s405, 128, 128, 8
        $region40: #{tpu_custom_call.1} parent=27 // pred_fallthru
          _
      $region28: #{tpu_custom_call.1} parent=5 // pred_fallthru
        _
      %p441 = scmp.le.s32.totalorder 2, %s20
      // Predicated region
      $region41: #{tpu_custom_call.1} parent=5 // pred_check
        %p442 = pneg %p441
      $region42: #{tpu_custom_call.1} parent=5 // pred_check_branch
        %444 = sbr.rel (%p442) target = $region44
      $region43: #{tpu_custom_call.1} parent=5 // pred_region
        %s445 = ssub.s32 %s20, 2
        // Predicated region
        $region45: #{tpu_custom_call.1} parent=43 // pred_check
          %p446 = pneg %p96
        $region46: #{tpu_custom_call.1} parent=43 // pred_check_branch
          %448 = sbr.rel (%p446) target = $region48
        $region47: #{tpu_custom_call.1} parent=43 // pred_region
          %s449 = sand.u32 %s81, 1
          %s450 = scalar_lea.sflag [#allocation5], %s449
          %s451 = sand.u32 %s81, 1
          %s452 = smul.addr %s451, 64
          %s453 = scalar_lea.vmem [#allocation6], %s452
          %454 = dma.done %s450, 1024
        $region48: #{tpu_custom_call.1} parent=43 // pred_fallthru
          _
        // Predicated region
        $region49: #{tpu_custom_call.1} parent=43 // pred_check
          %p455 = pneg %p122
        $region50: #{tpu_custom_call.1} parent=43 // pred_check_branch
          %457 = sbr.rel (%p455) target = $region52
        $region51: #{tpu_custom_call.1} parent=43 // pred_region
          %s458 = sand.u32 %s107, 1
          %s459 = scalar_lea.sflag [#allocation8], %s458
          %s460 = sand.u32 %s107, 1
          %s461 = smul.addr %s460, 32
          %s462 = scalar_lea.vmem [#allocation7], %s461
          %463 = dma.done %s459, 512
        $region52: #{tpu_custom_call.1} parent=43 // pred_fallthru
          _
      $region44: #{tpu_custom_call.1} parent=5 // pred_fallthru
        _
    $region6: #{tpu_custom_call.1} parent=1 // loop_footer
      %s24 = sadd.s32 1, %s20
    $region7: #{tpu_custom_call.1} parent=1 // loop_footer_branch
      %19 = sbr.rel target = $region3
    $region8: #{tpu_custom_call.1} parent=1 // loop_exit
      _
    %464 = vsyncpa [#allocation4], 1
    %s465 = scalar_lea.sflag [#allocation4], 1
    %466 = vsyncpa %s465, 1
    %467 = vsyncpa [#allocation5], 1
    %s468 = scalar_lea.sflag [#allocation5], 1
    %469 = vsyncpa %s468, 1
    %470 = vsyncpa [#allocation8], 1
    %s471 = scalar_lea.sflag [#allocation8], 1
    %472 = vsyncpa %s471, 1

</llo_original>
